<compile_context>
chip_gen: v7x
topology: tpu7x:2x2x1
jax: 0.10.0
libtpu: 0.0.40
codegen_flags: <defaults>
</compile_context>

<pallas_src>
import functools

import jax
import jax.numpy as jnp
from jax.experimental import pallas as pl
from jax.experimental.pallas import tpu as pltpu

HIDDEN1 = 256
HIDDEN2 = 512


def _round_up(x, m):
    return ((x + m - 1) // m) * m


def _leaky_relu(x, slope=0.2):
    return jnp.where(x > 0, x, slope * x)


def generator_kernel(z_ref, w1_ref, b1_ref, w2_ref, b2_ref, w3_ref, b3_ref,
                     o_ref):
    """Fused 3-layer MLP: (Linear+LeakyReLU) x2 -> Linear -> Tanh.

    Matmuls run in bf16 on the MXU with f32 accumulation; bias add, LeakyReLU
    and tanh run in f32 on the VPU/EUP. The whole batch tile stays resident in
    VMEM; weights are re-used across all grid steps (constant index_map).
    """
    z = z_ref[...]  # bf16 (tile, latent)

    h1 = jnp.dot(z, w1_ref[...], preferred_element_type=jnp.float32)
    h1 = _leaky_relu(h1 + b1_ref[...])

    h2 = jnp.dot(h1.astype(jnp.bfloat16), w2_ref[...],
                 preferred_element_type=jnp.float32)
    h2 = _leaky_relu(h2 + b2_ref[...])

    h3 = jnp.dot(h2.astype(jnp.bfloat16), w3_ref[...],
                 preferred_element_type=jnp.float32)
    h3 = h3 + b3_ref[...]

    o_ref[...] = jnp.tanh(h3).astype(o_ref.dtype)


@functools.partial(jax.jit, static_argnames=("batch_tile",))
def generator_forward(z, params, *, batch_tile=512):
    """Run the Generator forward pass via a single fused Pallas kernel.

    z: (B, latent_size) float32
    params: dict with w1 (latent,256), b1 (1,256), w2 (256,512), b2 (1,512),
            w3 (512,out), b3 (1,out) — stored in f32, cast to bf16 here.
    returns: (B, out) float32
    """
    w1, b1 = params["w1"], params["b1"]
    w2, b2 = params["w2"], params["b2"]
    w3, b3 = params["w3"], params["b3"]

    B, latent = z.shape
    out_size = w3.shape[1]

    # Lane-dense output: pad the final layer to a multiple of 128 lanes so the
    # output store is an unmasked vst. Padded columns are zero -> tanh(0)=0.
    out_padded = _round_up(out_size, 128)
    if out_padded != out_size:
        w3 = jnp.pad(w3, ((0, 0), (0, out_padded - out_size)))
        b3 = jnp.pad(b3, ((0, 0), (0, out_padded - out_size)))

    # Effective batch tile (multiple of 8) and zero-padding of the batch axis
    # so any B works (no divisibility assert). Small batches shrink the tile.
    tile = max(8, min(batch_tile, _round_up(B, 8)))
    tile = _round_up(tile, 8)
    b_padded = _round_up(B, tile)

    z_p = z if b_padded == B else jnp.pad(z, ((0, b_padded - B), (0, 0)))

    # bf16 matmul inputs (MXU fast path, half the weight bytes in VMEM/HBM).
    z_p = z_p.astype(jnp.bfloat16)
    w1 = w1.astype(jnp.bfloat16)
    w2 = w2.astype(jnp.bfloat16)
    w3 = w3.astype(jnp.bfloat16)

    grid = (b_padded // tile,)
    full = lambda i: (0, 0)  # weights/biases: same whole block every step

    # Advisory cost estimate for XLA scheduling around the custom call.
    flops = 2 * b_padded * (latent * HIDDEN1 + HIDDEN1 * HIDDEN2
                            + HIDDEN2 * out_padded)
    transcendentals = b_padded * out_padded  # tanh
    bytes_accessed = (z_p.size * 2
                      + (w1.size + w2.size + w3.size) * 2
                      + (b1.size + b2.size + b3.size) * 4
                      + b_padded * out_padded * 4)

    # Rough VMEM budget: double-buffered weights + z/out tiles + activations,
    # with generous margin. Never below the 32 MiB scoped default.
    act_bytes = tile * (latent * 2 + HIDDEN1 * 4 + HIDDEN2 * 4 + out_padded * 8)
    wgt_bytes = 2 * ((w1.size + w2.size + w3.size) * 2
                     + (b1.size + b2.size + b3.size) * 4)
    vmem_limit = int(max(32 * 1024 * 1024, 3 * act_bytes + wgt_bytes + (4 << 20)))

    out = pl.pallas_call(
        generator_kernel,
        out_shape=jax.ShapeDtypeStruct((b_padded, out_padded), jnp.float32),
        grid_spec=pltpu.PrefetchScalarGridSpec(
            num_scalar_prefetch=0,
            grid=grid,
            in_specs=[
                pl.BlockSpec((tile, latent), lambda i: (i, 0)),       # z tile
                pl.BlockSpec((latent, HIDDEN1), full),                # w1
                pl.BlockSpec((1, HIDDEN1), full),                     # b1
                pl.BlockSpec((HIDDEN1, HIDDEN2), full),               # w2
                pl.BlockSpec((1, HIDDEN2), full),                     # b2
                pl.BlockSpec((HIDDEN2, out_padded), full),            # w3
                pl.BlockSpec((1, out_padded), full),                  # b3
            ],
            out_specs=pl.BlockSpec((tile, out_padded), lambda i: (i, 0)),
        ),
        compiler_params=pltpu.CompilerParams(
            dimension_semantics=("parallel",),   # batch axis shards across TCs
            vmem_limit_bytes=vmem_limit,
        ),
        cost_estimate=pl.CostEstimate(
            flops=int(flops),
            transcendentals=int(transcendentals),
            bytes_accessed=int(bytes_accessed),
        ),
    )(z_p, w1, b1, w2, b2, w3, b3)

    return out[:B, :out_size]


def init_generator_params(key, latent_size, output_size):
    """Deterministic init mimicking PyTorch nn.Linear default:
    U(-1/sqrt(fan_in), 1/sqrt(fan_in)) for both weights and biases."""
    keys = jax.random.split(key, 6)

    def linear_init(kw, kb, fan_in, fan_out):
        bound = 1.0 / jnp.sqrt(jnp.float32(fan_in))
        w = jax.random.uniform(kw, (fan_in, fan_out), jnp.float32,
                               minval=-bound, maxval=bound)
        b = jax.random.uniform(kb, (1, fan_out), jnp.float32,
                               minval=-bound, maxval=bound)
        return w, b

    w1, b1 = linear_init(keys[0], keys[1], latent_size, HIDDEN1)
    w2, b2 = linear_init(keys[2], keys[3], HIDDEN1, HIDDEN2)
    w3, b3 = linear_init(keys[4], keys[5], HIDDEN2, output_size)
    return {"w1": w1, "b1": b1, "w2": w2, "b2": b2, "w3": w3, "b3": b3}


def _reference_forward_bf16(z, p):
    """Plain-JAX reference with the same bf16-matmul / f32-activation recipe."""
    h = jnp.dot(z.astype(jnp.bfloat16), p["w1"].astype(jnp.bfloat16),
                preferred_element_type=jnp.float32) + p["b1"]
    h = jnp.where(h > 0, h, 0.2 * h)
    h = jnp.dot(h.astype(jnp.bfloat16), p["w2"].astype(jnp.bfloat16),
                preferred_element_type=jnp.float32) + p["b2"]
    h = jnp.where(h > 0, h, 0.2 * h)
    h = jnp.dot(h.astype(jnp.bfloat16), p["w3"].astype(jnp.bfloat16),
                preferred_element_type=jnp.float32) + p["b3"]
    return jnp.tanh(h)


def _reference_forward_f32(z, p):
    """Full-f32 reference (exact PyTorch module semantics)."""
    h = jnp.dot(z, p["w1"]) + p["b1"]
    h = jnp.where(h > 0, h, 0.2 * h)
    h = jnp.dot(h, p["w2"]) + p["b2"]
    h = jnp.where(h > 0, h, 0.2 * h)
    h = jnp.dot(h, p["w3"]) + p["b3"]
    return jnp.tanh(h)


if __name__ == "__main__":
    latent_size = 32
    output_size = 64

    key = jax.random.PRNGKey(0)
    k_params, k_z1, k_z2 = jax.random.split(key, 3)
    params = init_generator_params(k_params, latent_size, output_size)

    # Small primary test (batch=16), consistent with the module's forward.
    z_small = jax.random.normal(k_z1, (16, latent_size), jnp.float32)
    out_small = jax.block_until_ready(generator_forward(z_small, params))
    assert out_small.shape == (16, output_size)
    ref_bf16 = _reference_forward_bf16(z_small, params)
    ref_f32 = _reference_forward_f32(z_small, params)
    assert jnp.allclose(out_small, ref_bf16, atol=2e-3, rtol=2e-3), \
        "mismatch vs bf16-matched reference"
    assert jnp.allclose(out_small, ref_f32, atol=3e-2, rtol=3e-2), \
        "mismatch vs f32 reference"

    # Non-divisible batch exercises the pad-and-slice path and a multi-step grid.
    z_odd = jax.random.normal(k_z2, (100, latent_size), jnp.float32)
    out_odd = jax.block_until_ready(
        generator_forward(z_odd, params, batch_tile=64))
    assert out_odd.shape == (100, output_size)
    assert jnp.allclose(out_odd, _reference_forward_bf16(z_odd, params),
                        atol=2e-3, rtol=2e-3), "mismatch on padded batch"

    print("KERNEL_OK")
</pallas_src>

<mosaic_0001>
module attributes {stable_mosaic.version = 11 : i64} {
  func.func @generator_kernel(%arg0: i32, %arg1: memref<16x32xbf16, #tpu.memory_space<vmem>>, %arg2: memref<32x256xbf16, #tpu.memory_space<vmem>>, %arg3: memref<1x256xf32, #tpu.memory_space<vmem>>, %arg4: memref<256x512xbf16, #tpu.memory_space<vmem>>, %arg5: memref<1x512xf32, #tpu.memory_space<vmem>>, %arg6: memref<512x128xbf16, #tpu.memory_space<vmem>>, %arg7: memref<1x128xf32, #tpu.memory_space<vmem>>, %arg8: memref<16x128xf32, #tpu.memory_space<vmem>>) attributes {dimension_semantics = [#tpu.dimension_semantics<parallel>], iteration_bounds = array<i64: 1>, scalar_prefetch = 0 : i64, scratch_operands = 0 : i64, tpu.core_type = #tpu.core_type<tc>, window_params = [{transform_indices = @transform_0, window_bounds = array<i64: 16, 32>}, {pipeline_mode = #tpu.pipeline_mode<synchronous>, transform_indices = @transform_1, window_bounds = array<i64: 32, 256>}, {pipeline_mode = #tpu.pipeline_mode<synchronous>, transform_indices = @transform_2, window_bounds = array<i64: 1, 256>}, {pipeline_mode = #tpu.pipeline_mode<synchronous>, transform_indices = @transform_3, window_bounds = array<i64: 256, 512>}, {pipeline_mode = #tpu.pipeline_mode<synchronous>, transform_indices = @transform_4, window_bounds = array<i64: 1, 512>}, {pipeline_mode = #tpu.pipeline_mode<synchronous>, transform_indices = @transform_5, window_bounds = array<i64: 512, 128>}, {pipeline_mode = #tpu.pipeline_mode<synchronous>, transform_indices = @transform_6, window_bounds = array<i64: 1, 128>}, {transform_indices = @transform_7, window_bounds = array<i64: 16, 128>}]} {
    %c0 = arith.constant 0 : index
    %c0_0 = arith.constant 0 : index
    %0 = vector.load %arg1[%c0, %c0_0] : memref<16x32xbf16, #tpu.memory_space<vmem>>, vector<16x32xbf16>
    %c0_1 = arith.constant 0 : index
    %c0_2 = arith.constant 0 : index
    %1 = vector.load %arg2[%c0_1, %c0_2] : memref<32x256xbf16, #tpu.memory_space<vmem>>, vector<32x256xbf16>
    %cst = arith.constant dense<0.000000e+00> : vector<16x256xf32>
    %2 = tpu.matmul %0, %1, %cst {dimension_numbers = #tpu.dot_dimension_numbers<[1], [0], [0], [1], [0, 0, 1, 1], [], []>} : vector<16x32xbf16>, vector<32x256xbf16>, vector<16x256xf32> -> vector<16x256xf32>
    %c0_3 = arith.constant 0 : index
    %c0_4 = arith.constant 0 : index
    %3 = vector.load %arg3[%c0_3, %c0_4] : memref<1x256xf32, #tpu.memory_space<vmem>>, vector<1x256xf32>
    %4 = vector.broadcast %3 : vector<1x256xf32> to vector<16x256xf32>
    %5 = arith.addf %2, %4 : vector<16x256xf32>
    %cst_5 = arith.constant 0.000000e+00 : f32
    %6 = vector.broadcast %cst_5 : f32 to vector<16x256xf32>
    %7 = arith.cmpf ogt, %5, %6 : vector<16x256xf32>
    %cst_6 = arith.constant 2.000000e-01 : f32
    %8 = vector.broadcast %cst_6 : f32 to vector<16x256xf32>
    %9 = arith.mulf %8, %5 : vector<16x256xf32>
    %10 = arith.select %7, %5, %9 : vector<16x256xi1>, vector<16x256xf32>
    %11 = arith.truncf %10 : vector<16x256xf32> to vector<16x256xbf16>
    %c0_7 = arith.constant 0 : index
    %c0_8 = arith.constant 0 : index
    %12 = vector.load %arg4[%c0_7, %c0_8] : memref<256x512xbf16, #tpu.memory_space<vmem>>, vector<256x512xbf16>
    %cst_9 = arith.constant dense<0.000000e+00> : vector<16x512xf32>
    %13 = tpu.matmul %11, %12, %cst_9 {dimension_numbers = #tpu.dot_dimension_numbers<[1], [0], [0], [1], [0, 0, 1, 1], [], []>} : vector<16x256xbf16>, vector<256x512xbf16>, vector<16x512xf32> -> vector<16x512xf32>
    %c0_10 = arith.constant 0 : index
    %c0_11 = arith.constant 0 : index
    %14 = vector.load %arg5[%c0_10, %c0_11] : memref<1x512xf32, #tpu.memory_space<vmem>>, vector<1x512xf32>
    %15 = vector.broadcast %14 : vector<1x512xf32> to vector<16x512xf32>
    %16 = arith.addf %13, %15 : vector<16x512xf32>
    %cst_12 = arith.constant 0.000000e+00 : f32
    %17 = vector.broadcast %cst_12 : f32 to vector<16x512xf32>
    %18 = arith.cmpf ogt, %16, %17 : vector<16x512xf32>
    %cst_13 = arith.constant 2.000000e-01 : f32
    %19 = vector.broadcast %cst_13 : f32 to vector<16x512xf32>
    %20 = arith.mulf %19, %16 : vector<16x512xf32>
    %21 = arith.select %18, %16, %20 : vector<16x512xi1>, vector<16x512xf32>
    %22 = arith.truncf %21 : vector<16x512xf32> to vector<16x512xbf16>
    %c0_14 = arith.constant 0 : index
    %c0_15 = arith.constant 0 : index
    %23 = vector.load %arg6[%c0_14, %c0_15] : memref<512x128xbf16, #tpu.memory_space<vmem>>, vector<512x128xbf16>
    %cst_16 = arith.constant dense<0.000000e+00> : vector<16x128xf32>
    %24 = tpu.matmul %22, %23, %cst_16 {dimension_numbers = #tpu.dot_dimension_numbers<[1], [0], [0], [1], [0, 0, 1, 1], [], []>} : vector<16x512xbf16>, vector<512x128xbf16>, vector<16x128xf32> -> vector<16x128xf32>
    %c0_17 = arith.constant 0 : index
    %c0_18 = arith.constant 0 : index
    %25 = vector.load %arg7[%c0_17, %c0_18] : memref<1x128xf32, #tpu.memory_space<vmem>>, vector<1x128xf32>
    %26 = vector.broadcast %25 : vector<1x128xf32> to vector<16x128xf32>
    %27 = arith.addf %24, %26 : vector<16x128xf32>
    %28 = math.tanh %27 : vector<16x128xf32>
    %c0_19 = arith.constant 0 : index
    %c0_20 = arith.constant 0 : index
    %29 = vector.load %arg8[%c0_19, %c0_20] : memref<16x128xf32, #tpu.memory_space<vmem>>, vector<16x128xf32>
    tpu.vector_store %arg8[%c0_19, %c0_20], %28 {strides = array<i32>} : memref<16x128xf32, #tpu.memory_space<vmem>>, vector<16x128xf32>,
    return
  }
  func.func @transform_0(%arg0: i32) -> (i32, i32) {
    %c0_i32 = arith.constant 0 : i32
    %c0_i32_0 = arith.constant 0 : i32
    return %arg0, %c0_i32 : i32, i32
  }
  func.func @transform_1(%arg0: i32) -> (i32, i32) {
    %c0_i32 = arith.constant 0 : i32
    %c0_i32_0 = arith.constant 0 : i32
    %c0_i32_1 = arith.constant 0 : i32
    return %c0_i32, %c0_i32_0 : i32, i32
  }
  func.func @transform_2(%arg0: i32) -> (i32, i32) {
    %c0_i32 = arith.constant 0 : i32
    %c0_i32_0 = arith.constant 0 : i32
    %c0_i32_1 = arith.constant 0 : i32
    return %c0_i32, %c0_i32_0 : i32, i32
  }
  func.func @transform_3(%arg0: i32) -> (i32, i32) {
    %c0_i32 = arith.constant 0 : i32
    %c0_i32_0 = arith.constant 0 : i32
    %c0_i32_1 = arith.constant 0 : i32
    return %c0_i32, %c0_i32_0 : i32, i32
  }
  func.func @transform_4(%arg0: i32) -> (i32, i32) {
    %c0_i32 = arith.constant 0 : i32
    %c0_i32_0 = arith.constant 0 : i32
    %c0_i32_1 = arith.constant 0 : i32
    return %c0_i32, %c0_i32_0 : i32, i32
  }
  func.func @transform_5(%arg0: i32) -> (i32, i32) {
    %c0_i32 = arith.constant 0 : i32
    %c0_i32_0 = arith.constant 0 : i32
    %c0_i32_1 = arith.constant 0 : i32
    return %c0_i32, %c0_i32_0 : i32, i32
  }
  func.func @transform_6(%arg0: i32) -> (i32, i32) {
    %c0_i32 = arith.constant 0 : i32
    %c0_i32_0 = arith.constant 0 : i32
    %c0_i32_1 = arith.constant 0 : i32
    return %c0_i32, %c0_i32_0 : i32, i32
  }
  func.func @transform_7(%arg0: i32) -> (i32, i32) {
    %c0_i32 = arith.constant 0 : i32
    %c0_i32_0 = arith.constant 0 : i32
    return %arg0, %c0_i32 : i32, i32
  }
}

</mosaic_0001>

<llo_original>
// kernel: generator_forward.1
$region0: #{generator_forward.1}
  #allocation0 [shape = 'u32[]', space=smem, size = 0x4, offset = 0x4, fixed_abs, tag = 'smem constant byte address 0x4 - core index']
  #allocation1 [shape = 'u32[144,128]{1,0:T(1,128)}', space=vmem, size = 0x12000, scoped, tag = 'internal scratch']
  %s0 = inlined_call_operand.vmem [shape: bf16[16,32], index: 0, kind: input, shape index: {}]
  %s1 = inlined_call_operand.vmem [shape: bf16[32,256], index: 1, kind: input, shape index: {}]
  %s2 = inlined_call_operand.vmem [shape: f32[1,256], index: 2, kind: input, shape index: {}]
  %s3 = inlined_call_operand.vmem [shape: bf16[256,512], index: 3, kind: input, shape index: {}]
  %s4 = inlined_call_operand.vmem [shape: f32[1,512], index: 4, kind: input, shape index: {}]
  %s5 = inlined_call_operand.vmem [shape: bf16[512,128], index: 5, kind: input, shape index: {}]
  %s6 = inlined_call_operand.vmem [shape: f32[1,128], index: 6, kind: input, shape index: {}]
  %s7 = inlined_call_operand.hbm [shape: f32[16,128], index: 7, kind: output, shape index: {}]
  %s8 = sld [smem:[#allocation0]]
  $region38: #{generator_forward.1} parent=0
    _
  %s10 = ssub.s32 1, %s8
  %s11 = scalar_select 0, %s10, %s8
  $region1: #{generator_forward.1} parent=0
    #allocation2 [shape = 'u8[8192]{0}', space=vmem, size = 0x2000, scoped, tag = 'output window, operand 0, single buffered']
    #allocation3 [shape = 's32[1]{0}', space=sflag, size = 0x4, scoped, tag = 'scoped memory for generator_forward.1']
    %12 = vsyncpa [#allocation3], 0
    // Predicated region
    $region2: #{generator_forward.1} parent=1 // pred_check
      _
    $region3: #{generator_forward.1} parent=1 // pred_check_branch
      %14 = sbr.rel (0) target = $region5
    $region4: #{generator_forward.1} parent=1 // pred_region
      _
    $region5: #{generator_forward.1} parent=1 // pred_fallthru
      _
    // Predicated region
    $region6: #{generator_forward.1} parent=1 // pred_check
      _
    $region7: #{generator_forward.1} parent=1 // pred_check_branch
      %16 = sbr.rel (0) target = $region9
    $region8: #{generator_forward.1} parent=1 // pred_region
      _
    $region9: #{generator_forward.1} parent=1 // pred_fallthru
      _
    // Predicated region
    $region10: #{generator_forward.1} parent=1 // pred_check
      _
    $region11: #{generator_forward.1} parent=1 // pred_check_branch
      %18 = sbr.rel (0) target = $region13
    $region12: #{generator_forward.1} parent=1 // pred_region
      _
    $region13: #{generator_forward.1} parent=1 // pred_fallthru
      _
    // Predicated region
    $region14: #{generator_forward.1} parent=1 // pred_check
      _
    $region15: #{generator_forward.1} parent=1 // pred_check_branch
      %20 = sbr.rel (0) target = $region17
    $region16: #{generator_forward.1} parent=1 // pred_region
      _
    $region17: #{generator_forward.1} parent=1 // pred_fallthru
      _
    // Predicated region
    $region18: #{generator_forward.1} parent=1 // pred_check
      _
    $region19: #{generator_forward.1} parent=1 // pred_check_branch
      %22 = sbr.rel (0) target = $region21
    $region20: #{generator_forward.1} parent=1 // pred_region
      _
    $region21: #{generator_forward.1} parent=1 // pred_fallthru
      _
    // Predicated region
    $region22: #{generator_forward.1} parent=1 // pred_check
      _
    $region23: #{generator_forward.1} parent=1 // pred_check_branch
      %24 = sbr.rel (0) target = $region25
    $region24: #{generator_forward.1} parent=1 // pred_region
      _
    $region25: #{generator_forward.1} parent=1 // pred_fallthru
      _
    // Predicated region
    $region26: #{generator_forward.1} parent=1 // pred_check
      _
    $region27: #{generator_forward.1} parent=1 // pred_check_branch
      %26 = sbr.rel (0) target = $region29
    $region28: #{generator_forward.1} parent=1 // pred_region
      _
    $region29: #{generator_forward.1} parent=1 // pred_fallthru
      _
    %v28 = vld [vmem:[%s0] sm:$0xf]
    %v29 = vld [vmem:[%s0 + $0x4] sm:$0xf]
    %v30 = vld [vmem:[%s1] sm:$0xff]
    %v31 = vld [vmem:[%s1 + $0x8] sm:$0xff]
    %v32 = vld [vmem:[%s1 + $0x10] sm:$0xff]
    %v33 = vld [vmem:[%s1 + $0x18] sm:$0xff]
    %v34 = vld [vmem:[%s2] sm:$0x3]
    %v36 = vlaneseq
    %v37 = vshrl.u32 %v36, 7
    %v38 = vsub.s32 0, %v37
    %v39 = vrot.slane %v34, %v38
    %v40 = vlaneseq
    %v41 = vshrl.u32 %v40, 7
    %v42 = vsub.s32 1, %v41
    %v43 = vrot.slane %v34, %v42
    %v48 = vunpack.c.l.b16 %v28
    %v49 = vunpack.c.l.b16 %v29
    %v50 = vpack.c.b16 %v49, %v48
    %v55 = vunpack.c.l.b16 %v30
    %v56 = vunpack.c.h.b16 %v30
    %v57 = vunpack.c.l.b16 %v31
    %v58 = vunpack.c.h.b16 %v31
    %v59 = vunpack.c.l.b16 %v32
    %v60 = vunpack.c.h.b16 %v32
    %v61 = vunpack.c.l.b16 %v33
    %v62 = vunpack.c.h.b16 %v33
    %v63 = vpack.c.b16 %v57, %v55
    %v64 = vpack.c.b16 %v58, %v56
    %v65 = vpack.c.b16 %v61, %v59
    %v66 = vpack.c.b16 %v62, %v60
    %vm71 = vcmask 261120
    %v73 = vsel %vm71, %v50, 0
    %75 = vmatprep.subr.bf16.mxu0 %v64
    %76 = vmatpush1.bf16.msra.mxu0 %v63
    %77 = vmatprep.subr.bf16.mxu0 %v66
    %78 = vmatpush1.bf16.msra.mxu0 %v65
    %79 = vmatprep.subr.bf16.mxu0 0
    %80 = vmatpush1.bf16.msra.mxu0 0
    %81 = vmatprep.subr.bf16.mxu0 0
    %82 = vmatpush1.bf16.msra.mxu0 0
    %83 = vmatprep.subr.bf16.mxu0 0
    %84 = vmatpush1.bf16.msra.mxu0 0
    %85 = vmatprep.subr.bf16.mxu0 0
    %86 = vmatpush1.bf16.msra.mxu0 0
    %87 = vmatprep.subr.bf16.mxu0 0
    %88 = vmatpush1.bf16.msra.mxu0 0
    %89 = vmatprep.subr.bf16.mxu0 0
    %90 = vmatpush1.bf16.msra.mxu0 0
    %91 = vmatprep.subr.bf16.mxu0 0
    %92 = vmatpush1.bf16.msra.mxu0 0
    %93 = vmatprep.subr.bf16.mxu0 0
    %94 = vmatpush1.bf16.msra.mxu0 0
    %95 = vmatprep.subr.bf16.mxu0 0
    %96 = vmatpush1.bf16.msra.mxu0 0
    %97 = vmatprep.subr.bf16.mxu0 0
    %98 = vmatpush1.bf16.msra.mxu0 0
    %99 = vmatprep.subr.bf16.mxu0 0
    %100 = vmatpush1.bf16.msra.mxu0 0
    %101 = vmatprep.subr.bf16.mxu0 0
    %102 = vmatpush1.bf16.msra.mxu0 0
    %103 = vmatprep.subr.bf16.mxu0 0
    %104 = vmatpush1.bf16.msra.mxu0 0
    %105 = vmatprep.subr.bf16.mxu0 0
    %106 = vmatpush1.bf16.msra.mxu0 0
    %107 = vmatprep.mubr.bf16.mxu0 0
    %108 = vmatmul.mubr.bf16.gmra.mrb[0].mxu0 %v73
    %v109 = vpop.f32.mrb[0].mxu0
    %v110 = vadd.f32 %v39, %v109
    %v111 = vpop.f32.mrb[0].mxu0
    %v112 = vadd.f32 %v43, %v111
    %v113 = vpop.f32.mrb[0].mxu0
    %v114 = vadd.f32 %v39, %v113
    %v115 = vpop.f32.mrb[0].mxu0
    %v116 = vadd.f32 %v43, %v115
    %117 = vdwg.mxu0
    %vm118 = vcmp.gt.f32.partialorder %v110, 0.0
    %vm119 = vcmp.gt.f32.partialorder %v112, 0.0
    %vm120 = vcmp.gt.f32.partialorder %v114, 0.0
    %vm121 = vcmp.gt.f32.partialorder %v116, 0.0
    %v122 = vmul.f32 %v110, 0.2
    %v123 = vmul.f32 %v112, 0.2
    %v124 = vmul.f32 %v114, 0.2
    %v125 = vmul.f32 %v116, 0.2
    %v126 = vsel %vm118, %v110, %v122
    %v127 = vsel %vm119, %v112, %v123
    %v128 = vsel %vm120, %v114, %v124
    %v129 = vsel %vm121, %v116, %v125
    %v130 = vpack.c.bf16 %v128, %v126
    %v131 = vpack.c.bf16 %v129, %v127
    %v132 = vld [vmem:[%s3] sm:$0xff]
    %v133 = vld [vmem:[%s3 + $0x8] sm:$0xff]
    %v134 = vld [vmem:[%s3 + $0x10] sm:$0xff]
    %v135 = vld [vmem:[%s3 + $0x18] sm:$0xff]
    %v136 = vld [vmem:[%s3 + $0x20] sm:$0xff]
    %v137 = vld [vmem:[%s3 + $0x28] sm:$0xff]
    %v138 = vld [vmem:[%s3 + $0x30] sm:$0xff]
    %v139 = vld [vmem:[%s3 + $0x38] sm:$0xff]
    %v140 = vld [vmem:[%s3 + $0x40] sm:$0xff]
    %v141 = vld [vmem:[%s3 + $0x48] sm:$0xff]
    %v142 = vld [vmem:[%s3 + $0x50] sm:$0xff]
    %v143 = vld [vmem:[%s3 + $0x58] sm:$0xff]
    %v144 = vld [vmem:[%s3 + $0x60] sm:$0xff]
    %v145 = vld [vmem:[%s3 + $0x68] sm:$0xff]
    %v146 = vld [vmem:[%s3 + $0x70] sm:$0xff]
    %v147 = vld [vmem:[%s3 + $0x78] sm:$0xff]
    %v148 = vld [vmem:[%s3 + $0x80] sm:$0xff]
    %v149 = vld [vmem:[%s3 + $0x88] sm:$0xff]
    %v150 = vld [vmem:[%s3 + $0x90] sm:$0xff]
    %v151 = vld [vmem:[%s3 + $0x98] sm:$0xff]
    %v152 = vld [vmem:[%s3 + $0xa0] sm:$0xff]
    %v153 = vld [vmem:[%s3 + $0xa8] sm:$0xff]
    %v154 = vld [vmem:[%s3 + $0xb0] sm:$0xff]
    %v155 = vld [vmem:[%s3 + $0xb8] sm:$0xff]
    %v156 = vld [vmem:[%s3 + $0xc0] sm:$0xff]
    %v157 = vld [vmem:[%s3 + $0xc8] sm:$0xff]
    %v158 = vld [vmem:[%s3 + $0xd0] sm:$0xff]
    %v159 = vld [vmem:[%s3 + $0xd8] sm:$0xff]
    %v160 = vld [vmem:[%s3 + $0xe0] sm:$0xff]
    %v161 = vld [vmem:[%s3 + $0xe8] sm:$0xff]
    %v162 = vld [vmem:[%s3 + $0xf0] sm:$0xff]
    %v163 = vld [vmem:[%s3 + $0xf8] sm:$0xff]
    %v164 = vld [vmem:[%s3 + $0x100] sm:$0xff]
    %v165 = vld [vmem:[%s3 + $0x108] sm:$0xff]
    %v166 = vld [vmem:[%s3 + $0x110] sm:$0xff]
    %v167 = vld [vmem:[%s3 + $0x118] sm:$0xff]
    %v168 = vld [vmem:[%s3 + $0x120] sm:$0xff]
    %v169 = vld [vmem:[%s3 + $0x128] sm:$0xff]
    %v170 = vld [vmem:[%s3 + $0x130] sm:$0xff]
    %v171 = vld [vmem:[%s3 + $0x138] sm:$0xff]
    %v172 = vld [vmem:[%s3 + $0x140] sm:$0xff]
    %v173 = vld [vmem:[%s3 + $0x148] sm:$0xff]
    %v174 = vld [vmem:[%s3 + $0x150] sm:$0xff]
    %v175 = vld [vmem:[%s3 + $0x158] sm:$0xff]
    %v176 = vld [vmem:[%s3 + $0x160] sm:$0xff]
    %v177 = vld [vmem:[%s3 + $0x168] sm:$0xff]
    %v178 = vld [vmem:[%s3 + $0x170] sm:$0xff]
    %v179 = vld [vmem:[%s3 + $0x178] sm:$0xff]
    %v180 = vld [vmem:[%s3 + $0x180] sm:$0xff]
    %v181 = vld [vmem:[%s3 + $0x188] sm:$0xff]
    %v182 = vld [vmem:[%s3 + $0x190] sm:$0xff]
    %v183 = vld [vmem:[%s3 + $0x198] sm:$0xff]
    %v184 = vld [vmem:[%s3 + $0x1a0] sm:$0xff]
    %v185 = vld [vmem:[%s3 + $0x1a8] sm:$0xff]
    %v186 = vld [vmem:[%s3 + $0x1b0] sm:$0xff]
    %v187 = vld [vmem:[%s3 + $0x1b8] sm:$0xff]
    %v188 = vld [vmem:[%s3 + $0x1c0] sm:$0xff]
    %v189 = vld [vmem:[%s3 + $0x1c8] sm:$0xff]
    %v190 = vld [vmem:[%s3 + $0x1d0] sm:$0xff]
    %v191 = vld [vmem:[%s3 + $0x1d8] sm:$0xff]
    %v192 = vld [vmem:[%s3 + $0x1e0] sm:$0xff]
    %v193 = vld [vmem:[%s3 + $0x1e8] sm:$0xff]
    %v194 = vld [vmem:[%s3 + $0x1f0] sm:$0xff]
    %v195 = vld [vmem:[%s3 + $0x1f8] sm:$0xff]
    %v196 = vld [vmem:[%s4] sm:$0xf]
    %v198 = vlaneseq
    %v199 = vshrl.u32 %v198, 7
    %v200 = vsub.s32 0, %v199
    %v201 = vrot.slane %v196, %v200
    %v202 = vlaneseq
    %v203 = vshrl.u32 %v202, 7
    %v204 = vsub.s32 1, %v203
    %v205 = vrot.slane %v196, %v204
    %v206 = vlaneseq
    %v207 = vshrl.u32 %v206, 7
    %v208 = vsub.s32 2, %v207
    %v209 = vrot.slane %v196, %v208
    %v210 = vlaneseq
    %v211 = vshrl.u32 %v210, 7
    %v212 = vsub.s32 3, %v211
    %v213 = vrot.slane %v196, %v212
    %v282 = vunpack.c.l.b16 %v132
    %v283 = vunpack.c.h.b16 %v132
    %v284 = vunpack.c.l.b16 %v133
    %v285 = vunpack.c.h.b16 %v133
    %v286 = vunpack.c.l.b16 %v134
    %v287 = vunpack.c.h.b16 %v134
    %v288 = vunpack.c.l.b16 %v135
    %v289 = vunpack.c.h.b16 %v135
    %v290 = vunpack.c.l.b16 %v136
    %v291 = vunpack.c.h.b16 %v136
    %v292 = vunpack.c.l.b16 %v137
    %v293 = vunpack.c.h.b16 %v137
    %v294 = vunpack.c.l.b16 %v138
    %v295 = vunpack.c.h.b16 %v138
    %v296 = vunpack.c.l.b16 %v139
    %v297 = vunpack.c.h.b16 %v139
    %v298 = vunpack.c.l.b16 %v140
    %v299 = vunpack.c.h.b16 %v140
    %v300 = vunpack.c.l.b16 %v141
    %v301 = vunpack.c.h.b16 %v141
    %v302 = vunpack.c.l.b16 %v142
    %v303 = vunpack.c.h.b16 %v142
    %v304 = vunpack.c.l.b16 %v143
    %v305 = vunpack.c.h.b16 %v143
    %v306 = vunpack.c.l.b16 %v144
    %v307 = vunpack.c.h.b16 %v144
    %v308 = vunpack.c.l.b16 %v145
    %v309 = vunpack.c.h.b16 %v145
    %v310 = vunpack.c.l.b16 %v146
    %v311 = vunpack.c.h.b16 %v146
    %v312 = vunpack.c.l.b16 %v147
    %v313 = vunpack.c.h.b16 %v147
    %v314 = vunpack.c.l.b16 %v148
    %v315 = vunpack.c.h.b16 %v148
    %v316 = vunpack.c.l.b16 %v149
    %v317 = vunpack.c.h.b16 %v149
    %v318 = vunpack.c.l.b16 %v150
    %v319 = vunpack.c.h.b16 %v150
    %v320 = vunpack.c.l.b16 %v151
    %v321 = vunpack.c.h.b16 %v151
    %v322 = vunpack.c.l.b16 %v152
    %v323 = vunpack.c.h.b16 %v152
    %v324 = vunpack.c.l.b16 %v153
    %v325 = vunpack.c.h.b16 %v153
    %v326 = vunpack.c.l.b16 %v154
    %v327 = vunpack.c.h.b16 %v154
    %v328 = vunpack.c.l.b16 %v155
    %v329 = vunpack.c.h.b16 %v155
    %v330 = vunpack.c.l.b16 %v156
    %v331 = vunpack.c.h.b16 %v156
    %v332 = vunpack.c.l.b16 %v157
    %v333 = vunpack.c.h.b16 %v157
    %v334 = vunpack.c.l.b16 %v158
    %v335 = vunpack.c.h.b16 %v158
    %v336 = vunpack.c.l.b16 %v159
    %v337 = vunpack.c.h.b16 %v159
    %v338 = vunpack.c.l.b16 %v160
    %v339 = vunpack.c.h.b16 %v160
    %v340 = vunpack.c.l.b16 %v161
    %v341 = vunpack.c.h.b16 %v161
    %v342 = vunpack.c.l.b16 %v162
    %v343 = vunpack.c.h.b16 %v162
    %v344 = vunpack.c.l.b16 %v163
    %v345 = vunpack.c.h.b16 %v163
    %v346 = vunpack.c.l.b16 %v164
    %v347 = vunpack.c.h.b16 %v164
    %v348 = vunpack.c.l.b16 %v165
    %v349 = vunpack.c.h.b16 %v165
    %v350 = vunpack.c.l.b16 %v166
    %v351 = vunpack.c.h.b16 %v166
    %v352 = vunpack.c.l.b16 %v167
    %v353 = vunpack.c.h.b16 %v167
    %v354 = vunpack.c.l.b16 %v168
    %v355 = vunpack.c.h.b16 %v168
    %v356 = vunpack.c.l.b16 %v169
    %v357 = vunpack.c.h.b16 %v169
    %v358 = vunpack.c.l.b16 %v170
    %v359 = vunpack.c.h.b16 %v170
    %v360 = vunpack.c.l.b16 %v171
    %v361 = vunpack.c.h.b16 %v171
    %v362 = vunpack.c.l.b16 %v172
    %v363 = vunpack.c.h.b16 %v172
    %v364 = vunpack.c.l.b16 %v173
    %v365 = vunpack.c.h.b16 %v173
    %v366 = vunpack.c.l.b16 %v174
    %v367 = vunpack.c.h.b16 %v174
    %v368 = vunpack.c.l.b16 %v175
    %v369 = vunpack.c.h.b16 %v175
    %v370 = vunpack.c.l.b16 %v176
    %v371 = vunpack.c.h.b16 %v176
    %v372 = vunpack.c.l.b16 %v177
    %v373 = vunpack.c.h.b16 %v177
    %v374 = vunpack.c.l.b16 %v178
    %v375 = vunpack.c.h.b16 %v178
    %v376 = vunpack.c.l.b16 %v179
    %v377 = vunpack.c.h.b16 %v179
    %v378 = vunpack.c.l.b16 %v180
    %v379 = vunpack.c.h.b16 %v180
    %v380 = vunpack.c.l.b16 %v181
    %v381 = vunpack.c.h.b16 %v181
    %v382 = vunpack.c.l.b16 %v182
    %v383 = vunpack.c.h.b16 %v182
    %v384 = vunpack.c.l.b16 %v183
    %v385 = vunpack.c.h.b16 %v183
    %v386 = vunpack.c.l.b16 %v184
    %v387 = vunpack.c.h.b16 %v184
    %v388 = vunpack.c.l.b16 %v185
    %v389 = vunpack.c.h.b16 %v185
    %v390 = vunpack.c.l.b16 %v186
    %v391 = vunpack.c.h.b16 %v186
    %v392 = vunpack.c.l.b16 %v187
    %v393 = vunpack.c.h.b16 %v187
    %v394 = vunpack.c.l.b16 %v188
    %v395 = vunpack.c.h.b16 %v188
    %v396 = vunpack.c.l.b16 %v189
    %v397 = vunpack.c.h.b16 %v189
    %v398 = vunpack.c.l.b16 %v190
    %v399 = vunpack.c.h.b16 %v190
    %v400 = vunpack.c.l.b16 %v191
    %v401 = vunpack.c.h.b16 %v191
    %v402 = vunpack.c.l.b16 %v192
    %v403 = vunpack.c.h.b16 %v192
    %v404 = vunpack.c.l.b16 %v193
    %v405 = vunpack.c.h.b16 %v193
    %v406 = vunpack.c.l.b16 %v194
    %v407 = vunpack.c.h.b16 %v194
    %v408 = vunpack.c.l.b16 %v195
    %v409 = vunpack.c.h.b16 %v195
    %v410 = vpack.c.b16 %v286, %v282
    %v411 = vpack.c.b16 %v287, %v283
    %v412 = vpack.c.b16 %v288, %v284
    %v413 = vpack.c.b16 %v289, %v285
    %v414 = vpack.c.b16 %v294, %v290
    %v415 = vpack.c.b16 %v295, %v291
    %v416 = vpack.c.b16 %v296, %v292
    %v417 = vpack.c.b16 %v297, %v293
    %v418 = vpack.c.b16 %v302, %v298
    %v419 = vpack.c.b16 %v303, %v299
    %v420 = vpack.c.b16 %v304, %v300
    %v421 = vpack.c.b16 %v305, %v301
    %v422 = vpack.c.b16 %v310, %v306
    %v423 = vpack.c.b16 %v311, %v307
    %v424 = vpack.c.b16 %v312, %v308
    %v425 = vpack.c.b16 %v313, %v309
    %v426 = vpack.c.b16 %v318, %v314
    %v427 = vpack.c.b16 %v319, %v315
    %v428 = vpack.c.b16 %v320, %v316
    %v429 = vpack.c.b16 %v321, %v317
    %v430 = vpack.c.b16 %v326, %v322
    %v431 = vpack.c.b16 %v327, %v323
    %v432 = vpack.c.b16 %v328, %v324
    %v433 = vpack.c.b16 %v329, %v325
    %v434 = vpack.c.b16 %v334, %v330
    %v435 = vpack.c.b16 %v335, %v331
    %v436 = vpack.c.b16 %v336, %v332
    %v437 = vpack.c.b16 %v337, %v333
    %v438 = vpack.c.b16 %v342, %v338
    %v439 = vpack.c.b16 %v343, %v339
    %v440 = vpack.c.b16 %v344, %v340
    %v441 = vpack.c.b16 %v345, %v341
    %v442 = vpack.c.b16 %v350, %v346
    %v443 = vpack.c.b16 %v351, %v347
    %v444 = vpack.c.b16 %v352, %v348
    %v445 = vpack.c.b16 %v353, %v349
    %v446 = vpack.c.b16 %v358, %v354
    %v447 = vpack.c.b16 %v359, %v355
    %v448 = vpack.c.b16 %v360, %v356
    %v449 = vpack.c.b16 %v361, %v357
    %v450 = vpack.c.b16 %v366, %v362
    %v451 = vpack.c.b16 %v367, %v363
    %v452 = vpack.c.b16 %v368, %v364
    %v453 = vpack.c.b16 %v369, %v365
    %v454 = vpack.c.b16 %v374, %v370
    %v455 = vpack.c.b16 %v375, %v371
    %v456 = vpack.c.b16 %v376, %v372
    %v457 = vpack.c.b16 %v377, %v373
    %v458 = vpack.c.b16 %v382, %v378
    %v459 = vpack.c.b16 %v383, %v379
    %v460 = vpack.c.b16 %v384, %v380
    %v461 = vpack.c.b16 %v385, %v381
    %v462 = vpack.c.b16 %v390, %v386
    %v463 = vpack.c.b16 %v391, %v387
    %v464 = vpack.c.b16 %v392, %v388
    %v465 = vpack.c.b16 %v393, %v389
    %v466 = vpack.c.b16 %v398, %v394
    %v467 = vpack.c.b16 %v399, %v395
    %v468 = vpack.c.b16 %v400, %v396
    %v469 = vpack.c.b16 %v401, %v397
    %v470 = vpack.c.b16 %v406, %v402
    %v471 = vpack.c.b16 %v407, %v403
    %v472 = vpack.c.b16 %v408, %v404
    %v473 = vpack.c.b16 %v409, %v405
    %538 = vmatprep.subr.bf16.mxu0 %v411
    %539 = vmatpush1.bf16.msra.mxu0 %v410
    %540 = vmatprep.subr.bf16.mxu0 %v415
    %541 = vmatpush1.bf16.msra.mxu0 %v414
    %542 = vmatprep.subr.bf16.mxu0 %v419
    %543 = vmatpush1.bf16.msra.mxu0 %v418
    %544 = vmatprep.subr.bf16.mxu0 %v423
    %545 = vmatpush1.bf16.msra.mxu0 %v422
    %546 = vmatprep.subr.bf16.mxu0 %v427
    %547 = vmatpush1.bf16.msra.mxu0 %v426
    %548 = vmatprep.subr.bf16.mxu0 %v431
    %549 = vmatpush1.bf16.msra.mxu0 %v430
    %550 = vmatprep.subr.bf16.mxu0 %v435
    %551 = vmatpush1.bf16.msra.mxu0 %v434
    %552 = vmatprep.subr.bf16.mxu0 %v439
    %553 = vmatpush1.bf16.msra.mxu0 %v438
    %554 = vmatprep.subr.bf16.mxu0 %v443
    %555 = vmatpush1.bf16.msra.mxu0 %v442
    %556 = vmatprep.subr.bf16.mxu0 %v447
    %557 = vmatpush1.bf16.msra.mxu0 %v446
    %558 = vmatprep.subr.bf16.mxu0 %v451
    %559 = vmatpush1.bf16.msra.mxu0 %v450
    %560 = vmatprep.subr.bf16.mxu0 %v455
    %561 = vmatpush1.bf16.msra.mxu0 %v454
    %562 = vmatprep.subr.bf16.mxu0 %v459
    %563 = vmatpush1.bf16.msra.mxu0 %v458
    %564 = vmatprep.subr.bf16.mxu0 %v463
    %565 = vmatpush1.bf16.msra.mxu0 %v462
    %566 = vmatprep.subr.bf16.mxu0 %v467
    %567 = vmatpush1.bf16.msra.mxu0 %v466
    %568 = vmatprep.subr.bf16.mxu0 %v471
    %569 = vmatpush1.bf16.msra.mxu0 %v470
    %570 = vmatprep.mubr.bf16.mxu0 %v131
    %571 = vmatmul.mubr.bf16.gmra.mrb[0].mxu0 %v130
    %v572 = vpop.f32.mrb[0].mxu0
    %v573 = vadd.f32 %v201, %v572
    %v574 = vpop.f32.mrb[0].mxu0
    %v575 = vadd.f32 %v205, %v574
    %v576 = vpop.f32.mrb[0].mxu0
    %v577 = vadd.f32 %v201, %v576
    %v578 = vpop.f32.mrb[0].mxu0
    %v579 = vadd.f32 %v205, %v578
    %580 = vdwg.mxu0
    %581 = vmatprep.subr.bf16.mxu0 %v413
    %582 = vmatpush1.bf16.msra.mxu0 %v412
    %583 = vmatprep.subr.bf16.mxu0 %v417
    %584 = vmatpush1.bf16.msra.mxu0 %v416
    %585 = vmatprep.subr.bf16.mxu0 %v421
    %586 = vmatpush1.bf16.msra.mxu0 %v420
    %587 = vmatprep.subr.bf16.mxu0 %v425
    %588 = vmatpush1.bf16.msra.mxu0 %v424
    %589 = vmatprep.subr.bf16.mxu0 %v429
    %590 = vmatpush1.bf16.msra.mxu0 %v428
    %591 = vmatprep.subr.bf16.mxu0 %v433
    %592 = vmatpush1.bf16.msra.mxu0 %v432
    %593 = vmatprep.subr.bf16.mxu0 %v437
    %594 = vmatpush1.bf16.msra.mxu0 %v436
    %595 = vmatprep.subr.bf16.mxu0 %v441
    %596 = vmatpush1.bf16.msra.mxu0 %v440
    %597 = vmatprep.subr.bf16.mxu0 %v445
    %598 = vmatpush1.bf16.msra.mxu0 %v444
    %599 = vmatprep.subr.bf16.mxu0 %v449
    %600 = vmatpush1.bf16.msra.mxu0 %v448
    %601 = vmatprep.subr.bf16.mxu0 %v453
    %602 = vmatpush1.bf16.msra.mxu0 %v452
    %603 = vmatprep.subr.bf16.mxu0 %v457
    %604 = vmatpush1.bf16.msra.mxu0 %v456
    %605 = vmatprep.subr.bf16.mxu0 %v461
    %606 = vmatpush1.bf16.msra.mxu0 %v460
    %607 = vmatprep.subr.bf16.mxu0 %v465
    %608 = vmatpush1.bf16.msra.mxu0 %v464
    %609 = vmatprep.subr.bf16.mxu0 %v469
    %610 = vmatpush1.bf16.msra.mxu0 %v468
    %611 = vmatprep.subr.bf16.mxu0 %v473
    %612 = vmatpush1.bf16.msra.mxu0 %v472
    %613 = vmatprep.mubr.bf16.mxu0 %v131
    %614 = vmatmul.mubr.bf16.gmra.mrb[0].mxu0 %v130
    %v615 = vpop.f32.mrb[0].mxu0
    %v616 = vadd.f32 %v209, %v615
    %v617 = vpop.f32.mrb[0].mxu0
    %v618 = vadd.f32 %v213, %v617
    %v619 = vpop.f32.mrb[0].mxu0
    %v620 = vadd.f32 %v209, %v619
    %v621 = vpop.f32.mrb[0].mxu0
    %v622 = vadd.f32 %v213, %v621
    %623 = vdwg.mxu0
    %vm624 = vcmp.gt.f32.partialorder %v573, 0.0
    %vm625 = vcmp.gt.f32.partialorder %v575, 0.0
    %vm626 = vcmp.gt.f32.partialorder %v616, 0.0
    %vm627 = vcmp.gt.f32.partialorder %v618, 0.0
    %vm628 = vcmp.gt.f32.partialorder %v577, 0.0
    %vm629 = vcmp.gt.f32.partialorder %v579, 0.0
    %vm630 = vcmp.gt.f32.partialorder %v620, 0.0
    %vm631 = vcmp.gt.f32.partialorder %v622, 0.0
    %v632 = vmul.f32 %v573, 0.2
    %v633 = vmul.f32 %v575, 0.2
    %v634 = vmul.f32 %v616, 0.2
    %v635 = vmul.f32 %v618, 0.2
    %v636 = vmul.f32 %v577, 0.2
    %v637 = vmul.f32 %v579, 0.2
    %v638 = vmul.f32 %v620, 0.2
    %v639 = vmul.f32 %v622, 0.2
    %v640 = vsel %vm624, %v573, %v632
    %v641 = vsel %vm625, %v575, %v633
    %v642 = vsel %vm626, %v616, %v634
    %v643 = vsel %vm627, %v618, %v635
    %v644 = vsel %vm628, %v577, %v636
    %v645 = vsel %vm629, %v579, %v637
    %v646 = vsel %vm630, %v620, %v638
    %v647 = vsel %vm631, %v622, %v639
    %v648 = vpack.c.bf16 %v644, %v640
    %v649 = vpack.c.bf16 %v645, %v641
    %v650 = vpack.c.bf16 %v646, %v642
    %v651 = vpack.c.bf16 %v647, %v643
    %v652 = vld [vmem:[%s5] sm:$0xf]
    %v653 = vld [vmem:[%s5 + $0x4] sm:$0xf]
    %v654 = vld [vmem:[%s5 + $0x8] sm:$0xf]
    %v655 = vld [vmem:[%s5 + $0xc] sm:$0xf]
    %v656 = vld [vmem:[%s5 + $0x10] sm:$0xf]
    %v657 = vld [vmem:[%s5 + $0x14] sm:$0xf]
    %v658 = vld [vmem:[%s5 + $0x18] sm:$0xf]
    %v659 = vld [vmem:[%s5 + $0x1c] sm:$0xf]
    %v660 = vld [vmem:[%s5 + $0x20] sm:$0xf]
    %v661 = vld [vmem:[%s5 + $0x24] sm:$0xf]
    %v662 = vld [vmem:[%s5 + $0x28] sm:$0xf]
    %v663 = vld [vmem:[%s5 + $0x2c] sm:$0xf]
    %v664 = vld [vmem:[%s5 + $0x30] sm:$0xf]
    %v665 = vld [vmem:[%s5 + $0x34] sm:$0xf]
    %v666 = vld [vmem:[%s5 + $0x38] sm:$0xf]
    %v667 = vld [vmem:[%s5 + $0x3c] sm:$0xf]
    %v668 = vld [vmem:[%s5 + $0x40] sm:$0xf]
    %v669 = vld [vmem:[%s5 + $0x44] sm:$0xf]
    %v670 = vld [vmem:[%s5 + $0x48] sm:$0xf]
    %v671 = vld [vmem:[%s5 + $0x4c] sm:$0xf]
    %v672 = vld [vmem:[%s5 + $0x50] sm:$0xf]
    %v673 = vld [vmem:[%s5 + $0x54] sm:$0xf]
    %v674 = vld [vmem:[%s5 + $0x58] sm:$0xf]
    %v675 = vld [vmem:[%s5 + $0x5c] sm:$0xf]
    %v676 = vld [vmem:[%s5 + $0x60] sm:$0xf]
    %v677 = vld [vmem:[%s5 + $0x64] sm:$0xf]
    %v678 = vld [vmem:[%s5 + $0x68] sm:$0xf]
    %v679 = vld [vmem:[%s5 + $0x6c] sm:$0xf]
    %v680 = vld [vmem:[%s5 + $0x70] sm:$0xf]
    %v681 = vld [vmem:[%s5 + $0x74] sm:$0xf]
    %v682 = vld [vmem:[%s5 + $0x78] sm:$0xf]
    %v683 = vld [vmem:[%s5 + $0x7c] sm:$0xf]
    %v684 = vld [vmem:[%s5 + $0x80] sm:$0xf]
    %v685 = vld [vmem:[%s5 + $0x84] sm:$0xf]
    %v686 = vld [vmem:[%s5 + $0x88] sm:$0xf]
    %v687 = vld [vmem:[%s5 + $0x8c] sm:$0xf]
    %v688 = vld [vmem:[%s5 + $0x90] sm:$0xf]
    %v689 = vld [vmem:[%s5 + $0x94] sm:$0xf]
    %v690 = vld [vmem:[%s5 + $0x98] sm:$0xf]
    %v691 = vld [vmem:[%s5 + $0x9c] sm:$0xf]
    %v692 = vld [vmem:[%s5 + $0xa0] sm:$0xf]
    %v693 = vld [vmem:[%s5 + $0xa4] sm:$0xf]
    %v694 = vld [vmem:[%s5 + $0xa8] sm:$0xf]
    %v695 = vld [vmem:[%s5 + $0xac] sm:$0xf]
    %v696 = vld [vmem:[%s5 + $0xb0] sm:$0xf]
    %v697 = vld [vmem:[%s5 + $0xb4] sm:$0xf]
    %v698 = vld [vmem:[%s5 + $0xb8] sm:$0xf]
    %v699 = vld [vmem:[%s5 + $0xbc] sm:$0xf]
    %v700 = vld [vmem:[%s5 + $0xc0] sm:$0xf]
    %v701 = vld [vmem:[%s5 + $0xc4] sm:$0xf]
    %v702 = vld [vmem:[%s5 + $0xc8] sm:$0xf]
    %v703 = vld [vmem:[%s5 + $0xcc] sm:$0xf]
    %v704 = vld [vmem:[%s5 + $0xd0] sm:$0xf]
    %v705 = vld [vmem:[%s5 + $0xd4] sm:$0xf]
    %v706 = vld [vmem:[%s5 + $0xd8] sm:$0xf]
    %v707 = vld [vmem:[%s5 + $0xdc] sm:$0xf]
    %v708 = vld [vmem:[%s5 + $0xe0] sm:$0xf]
    %v709 = vld [vmem:[%s5 + $0xe4] sm:$0xf]
    %v710 = vld [vmem:[%s5 + $0xe8] sm:$0xf]
    %v711 = vld [vmem:[%s5 + $0xec] sm:$0xf]
    %v712 = vld [vmem:[%s5 + $0xf0] sm:$0xf]
    %v713 = vld [vmem:[%s5 + $0xf4] sm:$0xf]
    %v714 = vld [vmem:[%s5 + $0xf8] sm:$0xf]
    %v715 = vld [vmem:[%s5 + $0xfc] sm:$0xf]
    %v716 = vld [vmem:[%s6] sm:$0x1]
    %v718 = vlaneseq
    %v719 = vshrl.u32 %v718, 7
    %v720 = vsub.s32 0, %v719
    %v721 = vrot.slane %v716, %v720
    %v787 = vunpack.c.l.b16 %v652
    %v788 = vunpack.c.l.b16 %v653
    %v789 = vunpack.c.l.b16 %v654
    %v790 = vunpack.c.l.b16 %v655
    %v791 = vunpack.c.l.b16 %v656
    %v792 = vunpack.c.l.b16 %v657
    %v793 = vunpack.c.l.b16 %v658
    %v794 = vunpack.c.l.b16 %v659
    %v795 = vunpack.c.l.b16 %v660
    %v796 = vunpack.c.l.b16 %v661
    %v797 = vunpack.c.l.b16 %v662
    %v798 = vunpack.c.l.b16 %v663
    %v799 = vunpack.c.l.b16 %v664
    %v800 = vunpack.c.l.b16 %v665
    %v801 = vunpack.c.l.b16 %v666
    %v802 = vunpack.c.l.b16 %v667
    %v803 = vunpack.c.l.b16 %v668
    %v804 = vunpack.c.l.b16 %v669
    %v805 = vunpack.c.l.b16 %v670
    %v806 = vunpack.c.l.b16 %v671
    %v807 = vunpack.c.l.b16 %v672
    %v808 = vunpack.c.l.b16 %v673
    %v809 = vunpack.c.l.b16 %v674
    %v810 = vunpack.c.l.b16 %v675
    %v811 = vunpack.c.l.b16 %v676
    %v812 = vunpack.c.l.b16 %v677
    %v813 = vunpack.c.l.b16 %v678
    %v814 = vunpack.c.l.b16 %v679
    %v815 = vunpack.c.l.b16 %v680
    %v816 = vunpack.c.l.b16 %v681
    %v817 = vunpack.c.l.b16 %v682
    %v818 = vunpack.c.l.b16 %v683
    %v819 = vunpack.c.l.b16 %v684
    %v820 = vunpack.c.l.b16 %v685
    %v821 = vunpack.c.l.b16 %v686
    %v822 = vunpack.c.l.b16 %v687
    %v823 = vunpack.c.l.b16 %v688
    %v824 = vunpack.c.l.b16 %v689
    %v825 = vunpack.c.l.b16 %v690
    %v826 = vunpack.c.l.b16 %v691
    %v827 = vunpack.c.l.b16 %v692
    %v828 = vunpack.c.l.b16 %v693
    %v829 = vunpack.c.l.b16 %v694
    %v830 = vunpack.c.l.b16 %v695
    %v831 = vunpack.c.l.b16 %v696
    %v832 = vunpack.c.l.b16 %v697
    %v833 = vunpack.c.l.b16 %v698
    %v834 = vunpack.c.l.b16 %v699
    %v835 = vunpack.c.l.b16 %v700
    %v836 = vunpack.c.l.b16 %v701
    %v837 = vunpack.c.l.b16 %v702
    %v838 = vunpack.c.l.b16 %v703
    %v839 = vunpack.c.l.b16 %v704
    %v840 = vunpack.c.l.b16 %v705
    %v841 = vunpack.c.l.b16 %v706
    %v842 = vunpack.c.l.b16 %v707
    %v843 = vunpack.c.l.b16 %v708
    %v844 = vunpack.c.l.b16 %v709
    %v845 = vunpack.c.l.b16 %v710
    %v846 = vunpack.c.l.b16 %v711
    %v847 = vunpack.c.l.b16 %v712
    %v848 = vunpack.c.l.b16 %v713
    %v849 = vunpack.c.l.b16 %v714
    %v850 = vunpack.c.l.b16 %v715
    %v851 = vpack.c.b16 %v788, %v787
    %v852 = vpack.c.b16 %v790, %v789
    %v853 = vpack.c.b16 %v792, %v791
    %v854 = vpack.c.b16 %v794, %v793
    %v855 = vpack.c.b16 %v796, %v795
    %v856 = vpack.c.b16 %v798, %v797
    %v857 = vpack.c.b16 %v800, %v799
    %v858 = vpack.c.b16 %v802, %v801
    %v859 = vpack.c.b16 %v804, %v803
    %v860 = vpack.c.b16 %v806, %v805
    %v861 = vpack.c.b16 %v808, %v807
    %v862 = vpack.c.b16 %v810, %v809
    %v863 = vpack.c.b16 %v812, %v811
    %v864 = vpack.c.b16 %v814, %v813
    %v865 = vpack.c.b16 %v816, %v815
    %v866 = vpack.c.b16 %v818, %v817
    %v867 = vpack.c.b16 %v820, %v819
    %v868 = vpack.c.b16 %v822, %v821
    %v869 = vpack.c.b16 %v824, %v823
    %v870 = vpack.c.b16 %v826, %v825
    %v871 = vpack.c.b16 %v828, %v827
    %v872 = vpack.c.b16 %v830, %v829
    %v873 = vpack.c.b16 %v832, %v831
    %v874 = vpack.c.b16 %v834, %v833
    %v875 = vpack.c.b16 %v836, %v835
    %v876 = vpack.c.b16 %v838, %v837
    %v877 = vpack.c.b16 %v840, %v839
    %v878 = vpack.c.b16 %v842, %v841
    %v879 = vpack.c.b16 %v844, %v843
    %v880 = vpack.c.b16 %v846, %v845
    %v881 = vpack.c.b16 %v848, %v847
    %v882 = vpack.c.b16 %v850, %v849
    %915 = vmatprep.subr.bf16.mxu0 0
    %916 = vmatpush1.bf16.msra.mxu0 %v851
    %917 = vmatprep.subr.bf16.mxu0 0
    %918 = vmatpush1.bf16.msra.mxu0 %v852
    %919 = vmatprep.subr.bf16.mxu0 0
    %920 = vmatpush1.bf16.msra.mxu0 %v853
    %921 = vmatprep.subr.bf16.mxu0 0
    %922 = vmatpush1.bf16.msra.mxu0 %v854
    %923 = vmatprep.subr.bf16.mxu0 0
    %924 = vmatpush1.bf16.msra.mxu0 %v855
    %925 = vmatprep.subr.bf16.mxu0 0
    %926 = vmatpush1.bf16.msra.mxu0 %v856
    %927 = vmatprep.subr.bf16.mxu0 0
    %928 = vmatpush1.bf16.msra.mxu0 %v857
    %929 = vmatprep.subr.bf16.mxu0 0
    %930 = vmatpush1.bf16.msra.mxu0 %v858
    %931 = vmatprep.subr.bf16.mxu0 0
    %932 = vmatpush1.bf16.msra.mxu0 %v859
    %933 = vmatprep.subr.bf16.mxu0 0
    %934 = vmatpush1.bf16.msra.mxu0 %v860
    %935 = vmatprep.subr.bf16.mxu0 0
    %936 = vmatpush1.bf16.msra.mxu0 %v861
    %937 = vmatprep.subr.bf16.mxu0 0
    %938 = vmatpush1.bf16.msra.mxu0 %v862
    %939 = vmatprep.subr.bf16.mxu0 0
    %940 = vmatpush1.bf16.msra.mxu0 %v863
    %941 = vmatprep.subr.bf16.mxu0 0
    %942 = vmatpush1.bf16.msra.mxu0 %v864
    %943 = vmatprep.subr.bf16.mxu0 0
    %944 = vmatpush1.bf16.msra.mxu0 %v865
    %945 = vmatprep.subr.bf16.mxu0 0
    %946 = vmatpush1.bf16.msra.mxu0 %v866
    %947 = vmatprep.mubr.bf16.mxu0 %v649
    %948 = vmatmul.mubr.bf16.gmra.mrb[0].mxu0 %v648
    %v949 = vpop.f32.mrb[0].mxu0
    %v950 = vadd.f32 %v721, %v949
    %v951 = vpop.f32.mrb[0].mxu0
    %v952 = vpop.f32.mrb[0].mxu0
    %v953 = vadd.f32 %v721, %v952
    %v954 = vpop.f32.mrb[0].mxu0
    %955 = vdwg.mxu0
    %956 = vmatprep.subr.bf16.mxu0 0
    %957 = vmatpush1.bf16.msra.mxu0 %v867
    %958 = vmatprep.subr.bf16.mxu0 0
    %959 = vmatpush1.bf16.msra.mxu0 %v868
    %960 = vmatprep.subr.bf16.mxu0 0
    %961 = vmatpush1.bf16.msra.mxu0 %v869
    %962 = vmatprep.subr.bf16.mxu0 0
    %963 = vmatpush1.bf16.msra.mxu0 %v870
    %964 = vmatprep.subr.bf16.mxu0 0
    %965 = vmatpush1.bf16.msra.mxu0 %v871
    %966 = vmatprep.subr.bf16.mxu0 0
    %967 = vmatpush1.bf16.msra.mxu0 %v872
    %968 = vmatprep.subr.bf16.mxu0 0
    %969 = vmatpush1.bf16.msra.mxu0 %v873
    %970 = vmatprep.subr.bf16.mxu0 0
    %971 = vmatpush1.bf16.msra.mxu0 %v874
    %972 = vmatprep.subr.bf16.mxu0 0
    %973 = vmatpush1.bf16.msra.mxu0 %v875
    %974 = vmatprep.subr.bf16.mxu0 0
    %975 = vmatpush1.bf16.msra.mxu0 %v876
    %976 = vmatprep.subr.bf16.mxu0 0
    %977 = vmatpush1.bf16.msra.mxu0 %v877
    %978 = vmatprep.subr.bf16.mxu0 0
    %979 = vmatpush1.bf16.msra.mxu0 %v878
    %980 = vmatprep.subr.bf16.mxu0 0
    %981 = vmatpush1.bf16.msra.mxu0 %v879
    %982 = vmatprep.subr.bf16.mxu0 0
    %983 = vmatpush1.bf16.msra.mxu0 %v880
    %984 = vmatprep.subr.bf16.mxu0 0
    %985 = vmatpush1.bf16.msra.mxu0 %v881
    %986 = vmatprep.subr.bf16.mxu0 0
    %987 = vmatpush1.bf16.msra.mxu0 %v882
    %988 = vmatprep.mubr.bf16.mxu0 %v651
    %989 = vmatmul.mubr.bf16.gmra.mrb[0].mxu0 %v650
    %v990 = vpop.f32.mrb[0].mxu0
    %v991 = vadd.f32 %v950, %v990
    %v992 = vpop.f32.mrb[0].mxu0
    %v993 = vpop.f32.mrb[0].mxu0
    %v994 = vadd.f32 %v953, %v993
    %v995 = vpop.f32.mrb[0].mxu0
    %996 = vdwg.mxu0
    %v997 = vtanh.pop %v991
    %v998 = vtanh.pop %v994
    %999 = vst [vmem:[#allocation2] sm:$0xff] %v997
    %1000 = vst [vmem:[#allocation2 + $0x8] sm:$0xff] %v998
    // Predicated region
    $region30: #{generator_forward.1} parent=1 // pred_check
      _
    $region31: #{generator_forward.1} parent=1 // pred_check_branch
      %1002 = sbr.rel (0) target = $region33
    $region32: #{generator_forward.1} parent=1 // pred_region
      %s1004 = ssub.s32 256, 256
      %1005 = vsyncadd [#allocation3], %s1004
      %s1006 = sshll.u32 [#allocation2], 4
      %s1007 = int_to_ptr.vmem [resolvable:$true] %s1006
      %1012 = dma.vmem_to_hbm [thread:$0]  %s1007, 256, %s7, [#allocation3], 128, 128, 8
    $region33: #{generator_forward.1} parent=1 // pred_fallthru
      _
    // Predicated region
    $region34: #{generator_forward.1} parent=1 // pred_check
      _
    $region35: #{generator_forward.1} parent=1 // pred_check_branch
      %1014 = sbr.rel (0) target = $region37
    $region36: #{generator_forward.1} parent=1 // pred_region
      %1015 = dma.done [#allocation3], 256
    $region37: #{generator_forward.1} parent=1 // pred_fallthru
      _
    %1016 = vsyncpa [#allocation3], 1

</llo_original>
